<compile_context>
chip_gen: v7x
topology: tpu7x:2x2x1
jax: 0.10.0
libtpu: 0.0.40
codegen_flags: <defaults>
</compile_context>

<pallas_src>
import jax
import jax.numpy as jnp
from jax.experimental import pallas as pl
from jax.experimental.pallas import tpu as pltpu


_DEF_TILE_BYTES = 8 * 1024 * 1024    # target x-block size in bytes (dtype-independent)
_DEF_CHUNK_SUBLANES = 1024           # inner accumulation chunk (bounds f32 temporaries)


def _round_up(a, b):
    return ((a + b - 1) // b) * b


def _hinge(x, lb, ub, fused):
    if fused:
        # == relu(x-ub) + relu(lb-x) whenever lb <= ub (one fewer VALU op/elem).
        return jnp.maximum(jnp.maximum(x - ub, lb - x), 0.0)
    return jnp.maximum(x - ub, 0.0) + jnp.maximum(lb - x, 0.0)


def _make_kernel(sub, n_tiles, chunk, fused, mask_bound):
    """Build the kernel. `mask_bound` is None (no masking needed) or the static
    number of valid elements inside the LAST tile of every row."""

    def tile_partial(x_ref, lb, ub, masked):
        # Reduce one (SUB, 128) native-dtype tile to an (8, 128) f32 partial.
        acc = jnp.zeros((8, 128), jnp.float32)
        for c0 in range(0, sub, chunk):             # static unroll; c0/c1 mult of 8
            c1 = min(c0 + chunk, sub)
            xs = x_ref[c0:c1, :].astype(jnp.float32)
            t = _hinge(xs, lb, ub, fused)
            if masked:
                s_idx = jax.lax.broadcasted_iota(jnp.int32, (c1 - c0, 128), 0)
                l_idx = jax.lax.broadcasted_iota(jnp.int32, (c1 - c0, 128), 1)
                pos = (c0 + s_idx) * 128 + l_idx     # position within this tile
                t = jnp.where(pos < mask_bound, t, 0.0)
            # Sublane-group reduction: same physical layout -> free reshape,
            # then elementwise vreg adds (pure VALU, no XLU).
            acc = acc + t.reshape((c1 - c0) // 8, 8, 128).sum(axis=0)
        return acc

    def kernel(lbs_ref, ubs_ref, x_ref, o_ref):
        i = pl.program_id(0)                 # bounded-row index
        lb = lbs_ref[i]                      # f32 scalars from SMEM
        ub = ubs_ref[i]
        if mask_bound is None:
            o_ref[...] = tile_partial(x_ref, lb, ub, False)
        else:
            j = pl.program_id(1)             # tile index along the row

            @pl.when(j == n_tiles - 1)       # only the last tile needs masking
            def _():
                o_ref[...] = tile_partial(x_ref, lb, ub, True)

            @pl.when(j < n_tiles - 1)
            def _():
                o_ref[...] = tile_partial(x_ref, lb, ub, False)

    return kernel


def range_bound_reg(x, lbs, ubs, factor=1, *, tile_bytes=_DEF_TILE_BYTES,
                    chunk_sublanes=_DEF_CHUNK_SUBLANES):
    x = jnp.asarray(x)
    lbs = jnp.asarray(lbs)
    ubs = jnp.asarray(ubs)

    D0 = x.shape[0]
    P = x.shape[1]
    M = 1
    for d in x.shape[1:]:
        M *= d
    # Reference quirk preserved: loop i over range(x.shape[1]) but slice x[i]
    # along dim 0, so rows i >= P of x are never touched.
    assert P <= D0 and P <= lbs.shape[0] and P <= ubs.shape[0]
    if P == 0 or M == 0:
        return jnp.zeros((), jnp.float32)

    lb = lbs[:P].astype(jnp.float32)
    ub = ubs[:P].astype(jnp.float32)

    itemsize = jnp.dtype(x.dtype).itemsize
    sub_align = max(8, 32 // itemsize)            # 8 f32 / 16 bf16 / 32 int8-fp8

    # Generation-aware VMEM budget (v7x: 64 MiB/TC; v5e/v6e: 128 MiB).
    try:
        vmem_cap = int(pltpu.get_tpu_info().vmem_capacity_bytes)
    except Exception:
        vmem_cap = 64 * 1024 * 1024               # conservative fallback
    vmem_limit = min(40 * 1024 * 1024, (vmem_cap * 3) // 4)
    max_block_bytes = max(1 << 20, (vmem_limit - (8 << 20)) // 2)
    tile_bytes = min(tile_bytes, max_block_bytes)

    # Row layout: each bounded row is viewed as (L, 128); tiles are (SUB, 128).
    x2 = x.reshape(D0, M)                          # free row-major reshape
    if M % 128 == 0 and M >= 128 * 8:
        L = M // 128                               # no copy of x at all
        x_rows = x2
    else:
        # TODO(synk): rows whose length is not a multiple of 1024 still take one
        # zero-pad copy of the used rows; the padded tail is masked in-kernel
        # (no analytic correction, so no f32 cancellation).
        Mp = _round_up(M, 128 * 8)
        x_rows = jnp.pad(x2[:P], ((0, 0), (0, Mp - M)))
        L = Mp // 128
    x3 = x_rows.reshape(x_rows.shape[0], L, 128)

    # Tile sublanes: constant bytes across dtypes, aligned to the packing width.
    cap = max(sub_align, (tile_bytes // (128 * itemsize) // sub_align) * sub_align)
    if L >= cap:
        SUB = cap
    else:
        a = sub_align if L >= sub_align else 8
        SUB = (L // a) * a                         # <= L, multiple of 8
    nT = pl.cdiv(L, SUB)

    covered = nT * SUB * 128
    mask_bound = None
    if covered > M:                                # partial last block / padded lanes
        mask_bound = M - (nT - 1) * SUB * 128      # valid elements in the last tile

    chunk = max(8, (min(chunk_sublanes, SUB) // 8) * 8)

    # Fused hinge only when the bounds are statically known to be ordered.
    fused = False
    try:
        fused = bool(jnp.all(lb <= ub))
    except (jax.errors.ConcretizationTypeError, TypeError):
        fused = False

    kernel = _make_kernel(SUB, nT, chunk, fused, mask_bound)

    partials = pl.pallas_call(
        kernel,
        out_shape=jax.ShapeDtypeStruct((P, nT, 8, 128), jnp.float32),
        grid=(P, nT),
        in_specs=[
            pl.BlockSpec(memory_space=pltpu.MemorySpace.SMEM),      # lbs (P,)
            pl.BlockSpec(memory_space=pltpu.MemorySpace.SMEM),      # ubs (P,)
            pl.BlockSpec((None, SUB, 128), lambda i, j: (i, j, 0)),  # x tile
        ],
        out_specs=pl.BlockSpec((None, None, 8, 128),
                               lambda i, j: (i, j, 0, 0)),           # 4 KiB partial
        compiler_params=pltpu.CompilerParams(
            dimension_semantics=("parallel", "parallel"),
            vmem_limit_bytes=vmem_limit,
        ),
        cost_estimate=pl.CostEstimate(
            flops=4 * P * M,
            transcendentals=0,
            bytes_accessed=P * L * 128 * itemsize + P * nT * 8 * 128 * 4,
        ),
    )(lb, ub, x3)

    total = jnp.sum(partials)                      # tiny follow-up reduce
    return total * (factor / (2.0 * M))            # reference divides by original M


def range_bound_reg_ref(x, lbs, ubs, factor=1):
    # Pure-JAX transliteration of the PyTorch forward (for verification).
    loss = 0.0
    for i in range(x.shape[1]):
        lb = lbs[i]
        ub = ubs[i]
        upper = jnp.maximum(x[i] - ub, 0.0)
        lower = jnp.maximum(lb - x[i], 0.0)
        loss = loss + factor * jnp.mean(upper + lower) / 2.0
    return loss


if __name__ == "__main__":
    # Deterministic "module parameters": bounds dict -> lbs / ubs tensors.
    bounds = {
        "a": (0.0, 1.0),
        "b": (-0.5, 0.5),
        "c": (0.2, 0.8),
        "d": (-1.0, 1.0),
    }
    factor = 1
    lbs = jnp.array([v[0] for v in bounds.values()], dtype=jnp.float32)
    ubs = jnp.array([v[1] for v in bounds.values()], dtype=jnp.float32)

    key = jax.random.PRNGKey(0)
    k1, k2, k3, k4 = jax.random.split(key, 4)

    def check(name, got, want, tol=1e-5):
        got = float(got)
        want = float(want)
        assert abs(got - want) <= tol + tol * abs(want), (name, got, want)

    # 1) aligned rows (M = 1024): no padding, no masking, single tile per row.
    x1 = 2.0 * jax.random.normal(k1, (4, 4, 16, 16), dtype=jnp.float32)
    out1 = jax.block_until_ready(range_bound_reg(x1, lbs, ubs, factor))
    check("aligned", out1, range_bound_reg_ref(x1, lbs, ubs, factor))

    # 2) ragged rows (M = 105) with P < D0 and P < len(bounds): small pad +
    #    in-kernel tail masking, row masking via exact per-row fetch.
    x2 = 2.0 * jax.random.normal(k2, (5, 3, 7, 5), dtype=jnp.float32)
    out2 = jax.block_until_ready(range_bound_reg(x2, lbs, ubs, factor))
    check("ragged", out2, range_bound_reg_ref(x2, lbs, ubs, factor))

    # 3) multi-tile rows with a partial last tile + chunked in-kernel reduction
    #    (tiny tile/chunk sizes force SUB=16, nT=2, chunk=8 on a small array).
    x3 = 2.0 * jax.random.normal(k3, (4, 4, 40, 16), dtype=jnp.float32)
    out3 = jax.block_until_ready(
        range_bound_reg(x3, lbs, ubs, factor,
                        tile_bytes=16 * 128 * 4, chunk_sublanes=8))
    check("multi_tile", out3, range_bound_reg_ref(x3, lbs, ubs, factor))

    # 4) bf16 input: 16-sublane-aligned tiles, in-kernel upcast to f32.
    x4 = (2.0 * jax.random.normal(k4, (4, 4, 8, 64), dtype=jnp.float32)
          ).astype(jnp.bfloat16)
    out4 = jax.block_until_ready(range_bound_reg(x4, lbs, ubs, factor))
    check("bf16", out4, range_bound_reg_ref(x4, lbs, ubs, factor), tol=1e-4)

    # 5) degenerate bounds (lb > ub): exercises the exact unfused hinge path.
    lbs_bad = jnp.array([0.5, -0.5, 0.9, -1.0], dtype=jnp.float32)
    ubs_bad = jnp.array([-0.5, 0.5, 0.1, 1.0], dtype=jnp.float32)
    out5 = jax.block_until_ready(range_bound_reg(x1, lbs_bad, ubs_bad, factor))
    check("unfused", out5, range_bound_reg_ref(x1, lbs_bad, ubs_bad, factor))

    print("KERNEL_OK")
</pallas_src>

<mosaic_0001>
module attributes {stable_mosaic.version = 11 : i64} {
  func.func @kernel(%arg0: i32, %arg1: i32, %arg2: memref<4xf32, #tpu.memory_space<smem>>, %arg3: memref<4xf32, #tpu.memory_space<smem>>, %arg4: memref<1x8x128xf32, #tpu.memory_space<vmem>>, %arg5: memref<1x1x8x128xf32, #tpu.memory_space<vmem>>) attributes {dimension_semantics = [#tpu.dimension_semantics<parallel>, #tpu.dimension_semantics<parallel>], iteration_bounds = array<i64: 4, 1>, scalar_prefetch = 0 : i64, scratch_operands = 0 : i64, tpu.core_type = #tpu.core_type<tc>, window_params = [{transform_indices = @transform_0, window_bounds = array<i64: 4>}, {transform_indices = @transform_1, window_bounds = array<i64: 4>}, {transform_indices = @transform_2, window_bounds = array<i64: 1, 8, 128>}, {transform_indices = @transform_3, window_bounds = array<i64: 1, 1, 8, 128>}]} {
    %0 = arith.index_cast %arg0 : i32 to index
    %1 = memref.load %arg2[%0] : memref<4xf32, #tpu.memory_space<smem>>
    %2 = arith.index_cast %arg0 : i32 to index
    %3 = memref.load %arg3[%2] : memref<4xf32, #tpu.memory_space<smem>>
    %cst = arith.constant 0.000000e+00 : f32
    %4 = vector.broadcast %cst : f32 to vector<8x128xf32>
    %c0 = arith.constant 0 : index
    %c0_0 = arith.constant 0 : index
    %c0_1 = arith.constant 0 : index
    %5 = vector.load %arg4[%c0, %c0_0, %c0_1] : memref<1x8x128xf32, #tpu.memory_space<vmem>>, vector<1x8x128xf32>
    %6 = vector.shape_cast %5 : vector<1x8x128xf32> to vector<8x128xf32>
    %7 = vector.broadcast %3 : f32 to vector<8x128xf32>
    %8 = arith.subf %6, %7 : vector<8x128xf32>
    %9 = vector.broadcast %1 : f32 to vector<8x128xf32>
    %10 = arith.subf %9, %6 : vector<8x128xf32>
    %11 = arith.maximumf %8, %10 : vector<8x128xf32>
    %cst_2 = arith.constant 0.000000e+00 : f32
    %12 = vector.broadcast %cst_2 : f32 to vector<8x128xf32>
    %13 = arith.maximumf %11, %12 : vector<8x128xf32>
    %14 = vector.shape_cast %13 : vector<8x128xf32> to vector<1x8x128xf32>
    %cst_3 = arith.constant dense<0.000000e+00> : vector<8x128xf32>
    %15 = vector.multi_reduction <add>, %14, %cst_3 [0] : vector<1x8x128xf32> to vector<8x128xf32>
    %16 = arith.addf %4, %15 : vector<8x128xf32>
    %c0_4 = arith.constant 0 : index
    %c0_5 = arith.constant 0 : index
    %c0_6 = arith.constant 0 : index
    %c0_7 = arith.constant 0 : index
    %17 = vector.load %arg5[%c0_4, %c0_5, %c0_6, %c0_7] : memref<1x1x8x128xf32, #tpu.memory_space<vmem>>, vector<1x1x8x128xf32>
    %18 = vector.shape_cast %17 : vector<1x1x8x128xf32> to vector<8x128xf32>
    %19 = vector.shape_cast %16 : vector<8x128xf32> to vector<1x1x8x128xf32>
    tpu.vector_store %arg5[%c0_4, %c0_5, %c0_6, %c0_7], %19 {strides = array<i32>} : memref<1x1x8x128xf32, #tpu.memory_space<vmem>>, vector<1x1x8x128xf32>,
    return
  }
  func.func @transform_0(%arg0: i32, %arg1: i32) -> i32 {
    %c0_i32 = arith.constant 0 : i32
    %c0_i32_0 = arith.constant 0 : i32
    return %c0_i32 : i32
  }
  func.func @transform_1(%arg0: i32, %arg1: i32) -> i32 {
    %c0_i32 = arith.constant 0 : i32
    %c0_i32_0 = arith.constant 0 : i32
    return %c0_i32 : i32
  }
  func.func @transform_2(%arg0: i32, %arg1: i32) -> (i32, i32, i32) {
    %c0_i32 = arith.constant 0 : i32
    %c0_i32_0 = arith.constant 0 : i32
    return %arg0, %arg1, %c0_i32 : i32, i32, i32
  }
  func.func @transform_3(%arg0: i32, %arg1: i32) -> (i32, i32, i32, i32) {
    %c0_i32 = arith.constant 0 : i32
    %c0_i32_0 = arith.constant 0 : i32
    %c0_i32_1 = arith.constant 0 : i32
    return %arg0, %arg1, %c0_i32, %c0_i32_0 : i32, i32, i32, i32
  }
}

</mosaic_0001>

<llo_original>
// kernel: tpu_custom_call.1
$region0: #{tpu_custom_call.1}
  #allocation0 [shape = 'u32[]', space=smem, size = 0x4, offset = 0x4, fixed_abs, tag = 'smem constant byte address 0x4 - core index']
  #allocation1 [shape = 'u32[144,128]{1,0:T(1,128)}', space=vmem, size = 0x12000, scoped, tag = 'internal scratch']
  %s0 = inlined_call_operand.hbm [shape: f32[4], index: 0, kind: input, shape index: {}]
  %s1 = inlined_call_operand.vmem [shape: f32[4], index: 1, kind: input, shape index: {}]
  %s2 = inlined_call_operand.hbm [shape: f32[4,8,128], index: 2, kind: input, shape index: {}]
  %s3 = inlined_call_operand.hbm [shape: f32[4,1,8,128], index: 3, kind: output, shape index: {}]
  %s4 = sld [smem:[#allocation0]]
  $region57: #{tpu_custom_call.1} parent=0
    _
  %s6 = ssub.s32 1, %s4
  %s7 = scalar_select 0, %s6, %s4
  $region1: #{tpu_custom_call.1} parent=0
    #allocation2 [shape = 'u8[512]{0}', space=smem, size = 0x200, scoped, tag = 'input window, operand 0, single buffered']
    #allocation3 [shape = 's32[2]{0}', space=sflag, size = 0x8, scoped, tag = 'scoped memory for tpu_custom_call.1']
    #allocation4 [shape = 's32[2]{0}', space=sflag, size = 0x8, scoped, tag = 'scoped memory for tpu_custom_call.1']
    #allocation5 [shape = 's32[2]{0}', space=sflag, size = 0x8, scoped, tag = 'scoped memory for tpu_custom_call.1']
    #allocation6 [shape = 's32[2]{0}', space=sflag, size = 0x8, scoped, tag = 'scoped memory for tpu_custom_call.1']
    #allocation7 [shape = 'u8[512]{0}', space=smem, size = 0x200, scoped, tag = 'input window, operand 1, single buffered']
    #allocation8 [shape = 'u8[8192]{0}', space=vmem, size = 0x2000, scoped, tag = 'input window, operand 2']
    #allocation9 [shape = 'u8[8192]{0}', space=vmem, size = 0x2000, scoped, tag = 'output window, operand 0']
    %8 = vsyncpa [#allocation5], 0
    %9 = vsyncpa [#allocation6], 0
    %10 = vsyncpa [#allocation3], 0
    %s11 = scalar_lea.sflag [#allocation3], 1
    %12 = vsyncpa %s11, 0
    %13 = vsyncpa [#allocation4], 0
    %s14 = scalar_lea.sflag [#allocation4], 1
    %15 = vsyncpa %s14, 0
    loop: start=0, step=1, limit=6
    $region2: #{tpu_custom_call.1} parent=1 // loop_pre_header
      _
    $region3: #{tpu_custom_call.1} parent=1 // loop_header
      %s17 = sphi 0, %s21
      %p18 = scmp.ge.s32.totalorder %s17, 6
      %s24 = sphi 0, %s36
      %s25 = sphi 0, %s32
      %s26 = sphi 0, %s24
      %s27 = sphi 0, %s25
      %s28 = sphi 0, %s26
      %s29 = sphi 0, %s27
      %s37 = sphi 0, %s37
      %s39 = sphi 0, %s37
      %s40 = sphi 0, %s39
      %s54 = sphi 0, %s40
      %s58 = sphi 0, %s58
      %s60 = sphi 0, %s58
      %s61 = sphi 0, %s60
      %s75 = sphi 0, %s61
      %s83 = sphi 0, %s85
      %s86 = sphi 0, %s83
      %s87 = sphi 0, %s86
      %s103 = sphi 0, %s87
      %s111 = sphi 0, %s113
      %s114 = sphi 0, %s111
      %s115 = sphi 0, %s114
      %s131 = sphi 0, %s115
    $region4: #{tpu_custom_call.1} parent=1 // loop_header_branch
      %20 = sbr.rel (%p18) target = $region8
    $region5: #{tpu_custom_call.1} parent=1 // loop_body
      %s22 = ssub.s32 %s17, 1
      %s23 = ssub.s32 %s17, 2
      %s30 = sadd.s32 1, %s25
      %p31 = scmp.ge.s32.totalorder %s30, 1
      %s32 = scalar_select %p31, 0, %s30
      %s33 = sadd.s32 1, %s24
      %s34 = scalar_select %p31, %s33, %s24
      %p35 = scmp.ge.s32.totalorder %s34, 4
      %s36 = scalar_select %p35, 0, %s34
      %s38 = sadd.s32 %s37, 1
      %p41 = scmp.eq.s32.totalorder %s17, 3
      %p42 = scmp.ne.s32.totalorder %s37, %s39
      %p43 = scmp.eq.s32.totalorder %s17, 0
      %p44 = por %p42, %p43
      %p45 = scmp.ne.s32.totalorder %s37, %s39
      %p46 = scmp.eq.s32.totalorder %s22, 3
      %p47 = por %p45, %p46
      %p48 = scmp.ne.s32.totalorder %s39, %s40
      %p49 = scmp.eq.s32.totalorder %s22, 0
      %p50 = por %p48, %p49
      %p51 = scmp.ne.s32.totalorder %s39, %s40
      %p52 = scmp.eq.s32.totalorder %s23, 3
      %p53 = por %p51, %p52
      %p55 = scmp.ne.s32.totalorder %s40, %s54
      %p56 = scmp.eq.s32.totalorder %s23, 0
      %p57 = por %p55, %p56
      %s59 = sadd.s32 %s58, 1
      %p62 = scmp.eq.s32.totalorder %s17, 3
      %p63 = scmp.ne.s32.totalorder %s58, %s60
      %p64 = scmp.eq.s32.totalorder %s17, 0
      %p65 = por %p63, %p64
      %p66 = scmp.ne.s32.totalorder %s58, %s60
      %p67 = scmp.eq.s32.totalorder %s22, 3
      %p68 = por %p66, %p67
      %p69 = scmp.ne.s32.totalorder %s60, %s61
      %p70 = scmp.eq.s32.totalorder %s22, 0
      %p71 = por %p69, %p70
      %p72 = scmp.ne.s32.totalorder %s60, %s61
      %p73 = scmp.eq.s32.totalorder %s23, 3
      %p74 = por %p72, %p73
      %p76 = scmp.ne.s32.totalorder %s61, %s75
      %p77 = scmp.eq.s32.totalorder %s23, 0
      %p78 = por %p76, %p77
      %s79 = ssub.s32 %s24, %s36
      %s80 = ssub.s32 %s25, %s32
      %s81 = sor.u32 %s79, %s80
      %p82 = scmp.eq.s32.totalorder %s81, 0
      %s84 = sadd.s32 %s83, 1
      %s85 = scalar_select %p82, %s83, %s84
      %p88 = pneg %p82
      %p89 = scmp.eq.s32.totalorder %s17, 3
      %p90 = por %p88, %p89
      %p91 = scmp.ne.s32.totalorder %s83, %s86
      %p92 = scmp.eq.s32.totalorder %s17, 0
      %p93 = por %p91, %p92
      %p94 = scmp.ne.s32.totalorder %s83, %s86
      %p95 = scmp.eq.s32.totalorder %s22, 3
      %p96 = por %p94, %p95
      %p97 = scmp.ne.s32.totalorder %s86, %s87
      %p98 = scmp.eq.s32.totalorder %s22, 0
      %p99 = por %p97, %p98
      %p100 = scmp.ne.s32.totalorder %s86, %s87
      %p101 = scmp.eq.s32.totalorder %s23, 3
      %p102 = por %p100, %p101
      %p104 = scmp.ne.s32.totalorder %s87, %s103
      %p105 = scmp.eq.s32.totalorder %s23, 0
      %p106 = por %p104, %p105
      %s107 = ssub.s32 %s24, %s36
      %s108 = ssub.s32 %s25, %s32
      %s109 = sor.u32 %s107, %s108
      %p110 = scmp.eq.s32.totalorder %s109, 0
      %s112 = sadd.s32 %s111, 1
      %s113 = scalar_select %p110, %s111, %s112
      %p116 = pneg %p110
      %p117 = scmp.eq.s32.totalorder %s17, 3
      %p118 = por %p116, %p117
      %p119 = scmp.ne.s32.totalorder %s111, %s114
      %p120 = scmp.eq.s32.totalorder %s17, 0
      %p121 = por %p119, %p120
      %p122 = scmp.ne.s32.totalorder %s111, %s114
      %p123 = scmp.eq.s32.totalorder %s22, 3
      %p124 = por %p122, %p123
      %p125 = scmp.ne.s32.totalorder %s114, %s115
      %p126 = scmp.eq.s32.totalorder %s22, 0
      %p127 = por %p125, %p126
      %p128 = scmp.ne.s32.totalorder %s114, %s115
      %p129 = scmp.eq.s32.totalorder %s23, 3
      %p130 = por %p128, %p129
      %p132 = scmp.ne.s32.totalorder %s115, %s131
      %p133 = scmp.eq.s32.totalorder %s23, 0
      %p134 = por %p132, %p133
      %p135 = scmp.le.s32.totalorder 1, %s17
      %p136 = scmp.lt.s32.totalorder %s17, 5
      %p137 = pnand %p135, %p136
      %p138 = pneg %p137
      // Predicated region
      $region9: #{tpu_custom_call.1} parent=5 // pred_check
        _
      $region10: #{tpu_custom_call.1} parent=5 // pred_check_branch
        %140 = sbr.rel (%p137) target = $region12
      $region11: #{tpu_custom_call.1} parent=5 // pred_region
        %s141 = ssub.s32 %s17, 1
        // Predicated region
        $region13: #{tpu_custom_call.1} parent=11 // pred_check
          %p142 = pneg %p50
        $region14: #{tpu_custom_call.1} parent=11 // pred_check_branch
          %144 = sbr.rel (%p142) target = $region16
        $region15: #{tpu_custom_call.1} parent=11 // pred_region
          %s146 = ssub.s32 16, 16
          %147 = vsyncadd [#allocation5], %s146
          %150 = dma.hbm_to_smem %s0, 16, [#allocation2], [#allocation5]
        $region16: #{tpu_custom_call.1} parent=11 // pred_fallthru
          _
        // Predicated region
        $region17: #{tpu_custom_call.1} parent=11 // pred_check
          %p151 = pneg %p71
        $region18: #{tpu_custom_call.1} parent=11 // pred_check_branch
          %153 = sbr.rel (%p151) target = $region20
        $region19: #{tpu_custom_call.1} parent=11 // pred_region
          %s155 = ssub.s32 16, 16
          %156 = vsyncadd [#allocation6], %s155
          %s158 = sshll.u32 %s1, 4
          %s159 = int_to_ptr.vmem [resolvable:$true] %s158
          %161 = dma.vmem_to_smem %s159, 16, [#allocation7], [#allocation6]
        $region20: #{tpu_custom_call.1} parent=11 // pred_fallthru
          _
      $region12: #{tpu_custom_call.1} parent=5 // pred_fallthru
        _
      %p162 = scmp.lt.s32.totalorder %s17, 4
      // Predicated region
      $region21: #{tpu_custom_call.1} parent=5 // pred_check
        %p163 = pneg %p162
      $region22: #{tpu_custom_call.1} parent=5 // pred_check_branch
        %165 = sbr.rel (%p163) target = $region24
      $region23: #{tpu_custom_call.1} parent=5 // pred_region
        // Predicated region
        $region25: #{tpu_custom_call.1} parent=23 // pred_check
          %p166 = pneg %p93
        $region26: #{tpu_custom_call.1} parent=23 // pred_check_branch
          %168 = sbr.rel (%p166) target = $region28
        $region27: #{tpu_custom_call.1} parent=23 // pred_region
          %s169 = sand.u32 %s83, 1
          %s170 = scalar_lea.sflag [#allocation3], %s169
          %s171 = sand.u32 %s83, 1
          %s172 = smul.addr %s171, 8
          %s173 = scalar_lea.vmem [#allocation8], %s172
          %s175 = ssub.s32 128, 128
          %176 = vsyncadd %s170, %s175
          %s177 = sadd.s32 %s25, %s24
          %s178 = smul.addr %s177, 128
          %s179 = scalar_lea.hbm %s2, %s178
          %s181 = sshll.u32 %s173, 4
          %s182 = int_to_ptr.vmem [resolvable:$true] %s181
          %184 = dma.hbm_to_vmem [thread:$0]  %s179, 128, %s182, %s170
        $region28: #{tpu_custom_call.1} parent=23 // pred_fallthru
          _
      $region24: #{tpu_custom_call.1} parent=5 // pred_fallthru
        _
      %p185 = scmp.le.s32.totalorder 1, %s17
      %p186 = scmp.lt.s32.totalorder %s17, 5
      %p187 = pnand %p185, %p186
      %p188 = pneg %p187
      // Predicated region
      $region29: #{tpu_custom_call.1} parent=5 // pred_check
        _
      $region30: #{tpu_custom_call.1} parent=5 // pred_check_branch
        %190 = sbr.rel (%p187) target = $region32
      $region31: #{tpu_custom_call.1} parent=5 // pred_region
        %s191 = ssub.s32 %s17, 1
        // Predicated region
        $region33: #{tpu_custom_call.1} parent=31 // pred_check
          %p192 = pneg %p50
        $region34: #{tpu_custom_call.1} parent=31 // pred_check_branch
          %194 = sbr.rel (%p192) target = $region36
        $region35: #{tpu_custom_call.1} parent=31 // pred_region
          %195 = dma.done [#allocation5], 16
        $region36: #{tpu_custom_call.1} parent=31 // pred_fallthru
          _
        // Predicated region
        $region37: #{tpu_custom_call.1} parent=31 // pred_check
          %p196 = pneg %p71
        $region38: #{tpu_custom_call.1} parent=31 // pred_check_branch
          %198 = sbr.rel (%p196) target = $region40
        $region39: #{tpu_custom_call.1} parent=31 // pred_region
          %199 = dma.done [#allocation6], 16
        $region40: #{tpu_custom_call.1} parent=31 // pred_fallthru
          _
        %s200 = sand.u32 %s86, 1
        %s201 = scalar_lea.sflag [#allocation3], %s200
        %s202 = sand.u32 %s86, 1
        %s203 = smul.addr %s202, 8
        %s204 = scalar_lea.vmem [#allocation8], %s203
        // Predicated region
        $region41: #{tpu_custom_call.1} parent=31 // pred_check
          %p205 = pneg %p99
        $region42: #{tpu_custom_call.1} parent=31 // pred_check_branch
          %207 = sbr.rel (%p205) target = $region44
        $region43: #{tpu_custom_call.1} parent=31 // pred_region
          %208 = dma.done %s201, 128
        $region44: #{tpu_custom_call.1} parent=31 // pred_fallthru
          _
        %209 = sfence
        %p210 = pneg %p50
        %p211 = pneg %p47
        %p212 = pneg %p71
        %p213 = pneg %p68
        %s214 = sand.u32 %s86, 1
        %s215 = scalar_lea.sflag [#allocation3], %s214
        %s216 = sand.u32 %s86, 1
        %s217 = smul.addr %s216, 8
        %s218 = scalar_lea.vmem [#allocation8], %s217
        %p219 = pneg %p99
        %p220 = pneg %p96
        %p221 = pneg %p127
        %p222 = pneg %p124
        %s223 = sand.u32 %s114, 1
        %s224 = scalar_lea.sflag [#allocation4], %s223
        %s225 = sand.u32 %s114, 1
        %s226 = smul.addr %s225, 8
        %s227 = scalar_lea.vmem [#allocation9], %s226
        %s228 = sld [smem:[#allocation2 + %s26]]
        %s229 = sld [smem:[#allocation7 + %s26]]
        %v230 = vld [vmem:[%s204] sm:$0xff]
        %v231 = vstv %s229
        %v232 = vsub.f32 %v230, %v231
        %v233 = vstv %s228
        %v234 = vsub.f32 %v233, %v230
        %v235 = vmax.f32 %v232, %v234
        %v236 = vmax.f32 %v235, 0.0
        %v237 = vadd.f32 %v236, 0.0
        %v238 = vadd.f32 %v237, 0.0
        %239 = vst [vmem:[%s227] sm:$0xff] %v238
        %s240 = sand.u32 %s114, 1
        %s241 = scalar_lea.sflag [#allocation4], %s240
        %s242 = sand.u32 %s114, 1
        %s243 = smul.addr %s242, 8
        %s244 = scalar_lea.vmem [#allocation9], %s243
        // Predicated region
        $region45: #{tpu_custom_call.1} parent=31 // pred_check
          %p245 = pneg %p124
        $region46: #{tpu_custom_call.1} parent=31 // pred_check_branch
          %247 = sbr.rel (%p245) target = $region48
        $region47: #{tpu_custom_call.1} parent=31 // pred_region
          %s249 = ssub.s32 128, 128
          %250 = vsyncadd %s241, %s249
          %s251 = sadd.s32 %s27, %s26
          %s252 = smul.addr %s251, 128
          %s253 = scalar_lea.hbm %s3, %s252
          %s255 = sshll.u32 %s244, 4
          %s256 = int_to_ptr.vmem [resolvable:$true] %s255
          %258 = dma.vmem_to_hbm [thread:$0]  %s256, 128, %s253, %s241
        $region48: #{tpu_custom_call.1} parent=31 // pred_fallthru
          _
      $region32: #{tpu_custom_call.1} parent=5 // pred_fallthru
        _
      %p259 = scmp.le.s32.totalorder 2, %s17
      // Predicated region
      $region49: #{tpu_custom_call.1} parent=5 // pred_check
        %p260 = pneg %p259
      $region50: #{tpu_custom_call.1} parent=5 // pred_check_branch
        %262 = sbr.rel (%p260) target = $region52
      $region51: #{tpu_custom_call.1} parent=5 // pred_region
        %s263 = ssub.s32 %s17, 2
        // Predicated region
        $region53: #{tpu_custom_call.1} parent=51 // pred_check
          %p264 = pneg %p130
        $region54: #{tpu_custom_call.1} parent=51 // pred_check_branch
          %266 = sbr.rel (%p264) target = $region56
        $region55: #{tpu_custom_call.1} parent=51 // pred_region
          %s267 = sand.u32 %s115, 1
          %s268 = scalar_lea.sflag [#allocation4], %s267
          %s269 = sand.u32 %s115, 1
          %s270 = smul.addr %s269, 8
          %s271 = scalar_lea.vmem [#allocation9], %s270
          %272 = dma.done %s268, 128
        $region56: #{tpu_custom_call.1} parent=51 // pred_fallthru
          _
      $region52: #{tpu_custom_call.1} parent=5 // pred_fallthru
        _
    $region6: #{tpu_custom_call.1} parent=1 // loop_footer
      %s21 = sadd.s32 1, %s17
    $region7: #{tpu_custom_call.1} parent=1 // loop_footer_branch
      %16 = sbr.rel target = $region3
    $region8: #{tpu_custom_call.1} parent=1 // loop_exit
      _
    %273 = vsyncpa [#allocation3], 1
    %s274 = scalar_lea.sflag [#allocation3], 1
    %275 = vsyncpa %s274, 1
    %276 = vsyncpa [#allocation4], 1
    %s277 = scalar_lea.sflag [#allocation4], 1
    %278 = vsyncpa %s277, 1
    %279 = vsyncpa [#allocation5], 1
    %s280 = scalar_lea.sflag [#allocation5], 1
    %281 = vsyncpa %s280, 1
    %282 = vsyncpa [#allocation6], 1
    %s283 = scalar_lea.sflag [#allocation6], 1
    %284 = vsyncpa %s283, 1

</llo_original>
